<compile_context>
chip_gen: v7x
topology: tpu7x:2x2x1
jax: 0.10.0
libtpu: 0.0.40
codegen_flags: <defaults>
</compile_context>

<pallas_src>
import functools

import jax
import jax.numpy as jnp
from jax import lax
from jax.experimental import pallas as pl
from jax.experimental.pallas import tpu as pltpu

VOCAB_SIZE = 64       # vocab_size
EMBEDDING_DIM = 16    # embedding_dim
SAMPLE_SIZE = 8       # sample_size (context length)
HIDDEN = 128          # fixed by the module (linear1 out_features)
NEG_INF = -1e30       # fill for padded logit lanes (excluded from softmax)


def _round_up(x, m):
    return (x + m - 1) // m * m


def ngram_kernel(idx_ref, weff_ref, b1_ref, w2_ref, b2_ref, out_ref, oh_ref):
    bt, s_len = idx_ref.shape          # (batch tile, context length)
    sv, _ = weff_ref.shape             # (S*V, hidden)
    v = sv // s_len

    idx = idx_ref[...]                                            # (BT, S) int32
    band_iota = lax.broadcasted_iota(jnp.int32, (bt, v), 1)       # (BT, V)

    # Stage the fused one-hot block (BT, S*V) in VMEM scratch, one V-wide band
    # per context position: column s*V + idx[b, s] is 1.  Out-of-range indices
    # give an all-zero band instead of reading out of bounds.
    for s in range(s_len):
        oh_ref[:, s * v:(s + 1) * v] = (
            idx[:, s:s + 1] == band_iota).astype(oh_ref.dtype)

    # Embedding gather + linear1 as ONE MXU matmul (f32 accumulation), bias
    # added as a free broadcast-add after the dot.
    acc = jnp.dot(oh_ref[...], weff_ref[...],
                  preferred_element_type=jnp.float32) + b1_ref[...]   # (BT, H)
    hidden = jnp.maximum(acc, 0.0)                                    # ReLU

    logits = jnp.dot(hidden.astype(w2_ref.dtype), w2_ref[...],
                     preferred_element_type=jnp.float32) + b2_ref[...]  # (BT, V_PAD)

    # log_softmax over the lane dim; padded lanes hold NEG_INF -> exp() == 0.
    m = jnp.max(logits, axis=1, keepdims=True)
    z = logits - m
    lse = jnp.log(jnp.sum(jnp.exp(z), axis=1, keepdims=True))
    out_ref[...] = (z - lse).astype(out_ref.dtype)


def _default_block_b(b):
    # Target 256 rows (fills the 256-wide MXU on v6e/v7x), but keep >= 2 grid
    # steps when the batch allows so both v7x TensorCores get work.
    if b <= 8:
        return 8
    if b <= 512:
        return _round_up(pl.cdiv(b, 2), 8)
    return 256


@functools.partial(jax.jit, static_argnames=("block_b", "mxu_dtype"))
def ngram_forward(idx, emb, w1, b1, w2, b2, *, block_b=None,
                  mxu_dtype=jnp.bfloat16):
    b, s_len = idx.shape
    v, e = emb.shape
    h_dim = w1.shape[1]
    sv = s_len * v
    v_pad = _round_up(v, 128)

    if block_b is None:
        block_b = _default_block_b(b)
    num_tiles = pl.cdiv(b, block_b)
    bp = num_tiles * block_b
    idx_p = jnp.pad(idx, ((0, bp - b), (0, 0)))   # padded rows (idx=0), sliced off

    # Grid-invariant precompute (hoisted out of the kernel):
    #   W_eff[s*V + t, :] = emb[t, :] @ W1[s*E:(s+1)*E, :]
    weff = jnp.einsum("ve,seh->svh", emb, w1.reshape(s_len, e, h_dim),
                      precision=jax.lax.Precision.HIGHEST
                      ).reshape(sv, h_dim).astype(mxu_dtype)

    # Lane-dense logits: pad vocab to a multiple of 128.  Padded weight columns
    # are zero; padded bias lanes are NEG_INF so softmax ignores them.
    w2p = jnp.zeros((h_dim, v_pad), mxu_dtype).at[:, :v].set(w2.astype(mxu_dtype))
    b2p = jnp.full((1, v_pad), NEG_INF, jnp.float32).at[:, :v].set(b2)
    b1f = b1.astype(jnp.float32)

    itemsize = jnp.dtype(mxu_dtype).itemsize
    cost = pl.CostEstimate(
        flops=num_tiles * (2 * block_b * sv * h_dim
                           + 2 * block_b * h_dim * v_pad),
        transcendentals=bp * (v_pad + 1),
        bytes_accessed=(4 * bp * s_len                       # idx
                        + itemsize * (sv * h_dim + h_dim * v_pad)  # W_eff, W2
                        + 4 * (h_dim + v_pad)                # biases
                        + 4 * bp * v_pad),                   # output
    )

    out = pl.pallas_call(
        ngram_kernel,
        out_shape=jax.ShapeDtypeStruct((bp, v_pad), jnp.float32),
        grid_spec=pltpu.PrefetchScalarGridSpec(
            num_scalar_prefetch=0,
            grid=(num_tiles,),
            in_specs=[
                pl.BlockSpec((block_b, s_len), lambda i: (i, 0)),   # idx tile
                pl.BlockSpec((sv, h_dim), lambda i: (0, 0)),        # W_eff (resident)
                pl.BlockSpec((1, h_dim), lambda i: (0, 0)),         # b1
                pl.BlockSpec((h_dim, v_pad), lambda i: (0, 0)),     # W2 (padded)
                pl.BlockSpec((1, v_pad), lambda i: (0, 0)),         # b2 (padded)
            ],
            out_specs=pl.BlockSpec((block_b, v_pad), lambda i: (i, 0)),
            scratch_shapes=[pltpu.VMEM((block_b, sv), mxu_dtype)],  # one-hot staging
        ),
        compiler_params=pltpu.CompilerParams(
            dimension_semantics=("parallel",)),                     # 2 TCs on v7x
        cost_estimate=cost,
    )(idx_p, weff, b1f, w2p, b2p)

    return out[:b, :v]


def init_params(key):
    k_emb, k_w1, k_b1, k_w2, k_b2 = jax.random.split(key, 5)
    # nn.Embedding: N(0, 1)
    emb = jax.random.normal(k_emb, (VOCAB_SIZE, EMBEDDING_DIM), jnp.float32)
    # nn.Linear: U(-1/sqrt(fan_in), 1/sqrt(fan_in)); stored as (in, out)
    fan1 = SAMPLE_SIZE * EMBEDDING_DIM
    lim1 = 1.0 / jnp.sqrt(fan1)
    w1 = jax.random.uniform(k_w1, (fan1, HIDDEN), jnp.float32, -lim1, lim1)
    b1 = jax.random.uniform(k_b1, (1, HIDDEN), jnp.float32, -lim1, lim1)
    lim2 = 1.0 / jnp.sqrt(HIDDEN)
    w2 = jax.random.uniform(k_w2, (HIDDEN, VOCAB_SIZE), jnp.float32, -lim2, lim2)
    b2 = jax.random.uniform(k_b2, (1, VOCAB_SIZE), jnp.float32, -lim2, lim2)
    return emb, w1, b1, w2, b2


def reference_forward(idx, emb, w1, b1, w2, b2):
    p = jax.lax.Precision.HIGHEST
    embeds = emb[idx].reshape(idx.shape[0], -1)            # .view((B, -1))
    h = jnp.maximum(jnp.dot(embeds, w1, precision=p) + b1, 0.0)
    o = jnp.dot(h, w2, precision=p) + b2
    return jax.nn.log_softmax(o, axis=1)                   # F.log_softmax(dim=1)


if __name__ == "__main__":
    key = jax.random.PRNGKey(0)
    k_params, k_idx = jax.random.split(key)
    emb, w1, b1, w2, b2 = init_params(k_params)

    # Batched contexts: (B, S) -> (B, V) log-probs.
    batch = 16
    idx = jax.random.randint(k_idx, (batch, SAMPLE_SIZE), 0, VOCAB_SIZE,
                             dtype=jnp.int32)
    ref = reference_forward(idx, emb, w1, b1, w2, b2)

    # Exact-parity path (f32 MXU operands).
    out_f32 = jax.block_until_ready(
        ngram_forward(idx, emb, w1, b1, w2, b2, mxu_dtype=jnp.float32))
    assert out_f32.shape == (batch, VOCAB_SIZE), out_f32.shape
    assert jnp.allclose(out_f32, ref, atol=1e-4, rtol=1e-4), (
        f"f32 max abs err = {jnp.max(jnp.abs(out_f32 - ref))}")

    # Fast path (bf16 MXU operands, f32 accumulation) — the v6e/v7x setting.
    out_bf16 = jax.block_until_ready(ngram_forward(idx, emb, w1, b1, w2, b2))
    assert out_bf16.shape == (batch, VOCAB_SIZE), out_bf16.shape
    assert jnp.allclose(out_bf16, ref, atol=5e-2, rtol=5e-2), (
        f"bf16 max abs err = {jnp.max(jnp.abs(out_bf16 - ref))}")

    # The original module's forward (single context -> (1, vocab)) is B == 1.
    out1 = jax.block_until_ready(
        ngram_forward(idx[:1], emb, w1, b1, w2, b2, mxu_dtype=jnp.float32))
    assert out1.shape == (1, VOCAB_SIZE), out1.shape
    assert jnp.allclose(out1, ref[:1], atol=1e-4, rtol=1e-4)

    print("KERNEL_OK")
</pallas_src>

<mosaic_0001>
module attributes {stable_mosaic.version = 11 : i64} {
  func.func @ngram_kernel(%arg0: i32, %arg1: memref<8x8xi32, #tpu.memory_space<vmem>>, %arg2: memref<512x128xf32, #tpu.memory_space<vmem>>, %arg3: memref<1x128xf32, #tpu.memory_space<vmem>>, %arg4: memref<128x128xf32, #tpu.memory_space<vmem>>, %arg5: memref<1x128xf32, #tpu.memory_space<vmem>>, %arg6: memref<8x128xf32, #tpu.memory_space<vmem>>, %arg7: memref<8x512xf32, #tpu.memory_space<vmem>>) attributes {dimension_semantics = [#tpu.dimension_semantics<parallel>], iteration_bounds = array<i64: 2>, scalar_prefetch = 0 : i64, scratch_operands = 1 : i64, tpu.core_type = #tpu.core_type<tc>, window_params = [{transform_indices = @transform_0, window_bounds = array<i64: 8, 8>}, {pipeline_mode = #tpu.pipeline_mode<synchronous>, transform_indices = @transform_1, window_bounds = array<i64: 512, 128>}, {pipeline_mode = #tpu.pipeline_mode<synchronous>, transform_indices = @transform_2, window_bounds = array<i64: 1, 128>}, {pipeline_mode = #tpu.pipeline_mode<synchronous>, transform_indices = @transform_3, window_bounds = array<i64: 128, 128>}, {pipeline_mode = #tpu.pipeline_mode<synchronous>, transform_indices = @transform_4, window_bounds = array<i64: 1, 128>}, {transform_indices = @transform_5, window_bounds = array<i64: 8, 128>}]} {
    %c0 = arith.constant 0 : index
    %c0_0 = arith.constant 0 : index
    %0 = vector.load %arg1[%c0, %c0_0] : memref<8x8xi32, #tpu.memory_space<vmem>>, vector<8x8xi32>
    %1 = tpu.iota {dimensions = array<i32: 1>} : vector<8x64xi32>
    %2 = vector.extract_strided_slice %0 {offsets = [0, 0], sizes = [8, 1], strides = [1, 1]} : vector<8x8xi32> to vector<8x1xi32>
    %3 = vector.broadcast %2 : vector<8x1xi32> to vector<8x64xi32>
    %4 = arith.cmpi eq, %3, %1 : vector<8x64xi32>
    %5 = arith.extui %4 : vector<8x64xi1> to vector<8x64xi32>
    %6 = arith.sitofp %5 : vector<8x64xi32> to vector<8x64xf32>
    %c0_1 = arith.constant 0 : index
    %c0_2 = arith.constant 0 : index
    %7 = vector.load %arg7[%c0_1, %c0_2] : memref<8x512xf32, #tpu.memory_space<vmem>>, vector<8x64xf32>
    tpu.vector_store %arg7[%c0_1, %c0_2], %6 {strides = array<i32>} : memref<8x512xf32, #tpu.memory_space<vmem>>, vector<8x64xf32>,
    %8 = vector.extract_strided_slice %0 {offsets = [0, 1], sizes = [8, 1], strides = [1, 1]} : vector<8x8xi32> to vector<8x1xi32>
    %9 = vector.broadcast %8 : vector<8x1xi32> to vector<8x64xi32>
    %10 = arith.cmpi eq, %9, %1 : vector<8x64xi32>
    %11 = arith.extui %10 : vector<8x64xi1> to vector<8x64xi32>
    %12 = arith.sitofp %11 : vector<8x64xi32> to vector<8x64xf32>
    %c0_3 = arith.constant 0 : index
    %c64 = arith.constant 64 : index
    %13 = vector.load %arg7[%c0_3, %c64] : memref<8x512xf32, #tpu.memory_space<vmem>>, vector<8x64xf32>
    tpu.vector_store %arg7[%c0_3, %c64], %12 {strides = array<i32>} : memref<8x512xf32, #tpu.memory_space<vmem>>, vector<8x64xf32>,
    %14 = vector.extract_strided_slice %0 {offsets = [0, 2], sizes = [8, 1], strides = [1, 1]} : vector<8x8xi32> to vector<8x1xi32>
    %15 = vector.broadcast %14 : vector<8x1xi32> to vector<8x64xi32>
    %16 = arith.cmpi eq, %15, %1 : vector<8x64xi32>
    %17 = arith.extui %16 : vector<8x64xi1> to vector<8x64xi32>
    %18 = arith.sitofp %17 : vector<8x64xi32> to vector<8x64xf32>
    %c0_4 = arith.constant 0 : index
    %c128 = arith.constant 128 : index
    %19 = vector.load %arg7[%c0_4, %c128] : memref<8x512xf32, #tpu.memory_space<vmem>>, vector<8x64xf32>
    tpu.vector_store %arg7[%c0_4, %c128], %18 {strides = array<i32>} : memref<8x512xf32, #tpu.memory_space<vmem>>, vector<8x64xf32>,
    %20 = vector.extract_strided_slice %0 {offsets = [0, 3], sizes = [8, 1], strides = [1, 1]} : vector<8x8xi32> to vector<8x1xi32>
    %21 = vector.broadcast %20 : vector<8x1xi32> to vector<8x64xi32>
    %22 = arith.cmpi eq, %21, %1 : vector<8x64xi32>
    %23 = arith.extui %22 : vector<8x64xi1> to vector<8x64xi32>
    %24 = arith.sitofp %23 : vector<8x64xi32> to vector<8x64xf32>
    %c0_5 = arith.constant 0 : index
    %c192 = arith.constant 192 : index
    %25 = vector.load %arg7[%c0_5, %c192] : memref<8x512xf32, #tpu.memory_space<vmem>>, vector<8x64xf32>
    tpu.vector_store %arg7[%c0_5, %c192], %24 {strides = array<i32>} : memref<8x512xf32, #tpu.memory_space<vmem>>, vector<8x64xf32>,
    %26 = vector.extract_strided_slice %0 {offsets = [0, 4], sizes = [8, 1], strides = [1, 1]} : vector<8x8xi32> to vector<8x1xi32>
    %27 = vector.broadcast %26 : vector<8x1xi32> to vector<8x64xi32>
    %28 = arith.cmpi eq, %27, %1 : vector<8x64xi32>
    %29 = arith.extui %28 : vector<8x64xi1> to vector<8x64xi32>
    %30 = arith.sitofp %29 : vector<8x64xi32> to vector<8x64xf32>
    %c0_6 = arith.constant 0 : index
    %c256 = arith.constant 256 : index
    %31 = vector.load %arg7[%c0_6, %c256] : memref<8x512xf32, #tpu.memory_space<vmem>>, vector<8x64xf32>
    tpu.vector_store %arg7[%c0_6, %c256], %30 {strides = array<i32>} : memref<8x512xf32, #tpu.memory_space<vmem>>, vector<8x64xf32>,
    %32 = vector.extract_strided_slice %0 {offsets = [0, 5], sizes = [8, 1], strides = [1, 1]} : vector<8x8xi32> to vector<8x1xi32>
    %33 = vector.broadcast %32 : vector<8x1xi32> to vector<8x64xi32>
    %34 = arith.cmpi eq, %33, %1 : vector<8x64xi32>
    %35 = arith.extui %34 : vector<8x64xi1> to vector<8x64xi32>
    %36 = arith.sitofp %35 : vector<8x64xi32> to vector<8x64xf32>
    %c0_7 = arith.constant 0 : index
    %c320 = arith.constant 320 : index
    %37 = vector.load %arg7[%c0_7, %c320] : memref<8x512xf32, #tpu.memory_space<vmem>>, vector<8x64xf32>
    tpu.vector_store %arg7[%c0_7, %c320], %36 {strides = array<i32>} : memref<8x512xf32, #tpu.memory_space<vmem>>, vector<8x64xf32>,
    %38 = vector.extract_strided_slice %0 {offsets = [0, 6], sizes = [8, 1], strides = [1, 1]} : vector<8x8xi32> to vector<8x1xi32>
    %39 = vector.broadcast %38 : vector<8x1xi32> to vector<8x64xi32>
    %40 = arith.cmpi eq, %39, %1 : vector<8x64xi32>
    %41 = arith.extui %40 : vector<8x64xi1> to vector<8x64xi32>
    %42 = arith.sitofp %41 : vector<8x64xi32> to vector<8x64xf32>
    %c0_8 = arith.constant 0 : index
    %c384 = arith.constant 384 : index
    %43 = vector.load %arg7[%c0_8, %c384] : memref<8x512xf32, #tpu.memory_space<vmem>>, vector<8x64xf32>
    tpu.vector_store %arg7[%c0_8, %c384], %42 {strides = array<i32>} : memref<8x512xf32, #tpu.memory_space<vmem>>, vector<8x64xf32>,
    %44 = vector.extract_strided_slice %0 {offsets = [0, 7], sizes = [8, 1], strides = [1, 1]} : vector<8x8xi32> to vector<8x1xi32>
    %45 = vector.broadcast %44 : vector<8x1xi32> to vector<8x64xi32>
    %46 = arith.cmpi eq, %45, %1 : vector<8x64xi32>
    %47 = arith.extui %46 : vector<8x64xi1> to vector<8x64xi32>
    %48 = arith.sitofp %47 : vector<8x64xi32> to vector<8x64xf32>
    %c0_9 = arith.constant 0 : index
    %c448 = arith.constant 448 : index
    %49 = vector.load %arg7[%c0_9, %c448] : memref<8x512xf32, #tpu.memory_space<vmem>>, vector<8x64xf32>
    tpu.vector_store %arg7[%c0_9, %c448], %48 {strides = array<i32>} : memref<8x512xf32, #tpu.memory_space<vmem>>, vector<8x64xf32>,
    %c0_10 = arith.constant 0 : index
    %c0_11 = arith.constant 0 : index
    %50 = vector.load %arg7[%c0_10, %c0_11] : memref<8x512xf32, #tpu.memory_space<vmem>>, vector<8x512xf32>
    %c0_12 = arith.constant 0 : index
    %c0_13 = arith.constant 0 : index
    %51 = vector.load %arg2[%c0_12, %c0_13] : memref<512x128xf32, #tpu.memory_space<vmem>>, vector<512x128xf32>
    %cst = arith.constant dense<0.000000e+00> : vector<8x128xf32>
    %52 = tpu.matmul %50, %51, %cst {dimension_numbers = #tpu.dot_dimension_numbers<[1], [0], [0], [1], [0, 0, 1, 1], [], []>} : vector<8x512xf32>, vector<512x128xf32>, vector<8x128xf32> -> vector<8x128xf32>
    %c0_14 = arith.constant 0 : index
    %c0_15 = arith.constant 0 : index
    %53 = vector.load %arg3[%c0_14, %c0_15] : memref<1x128xf32, #tpu.memory_space<vmem>>, vector<1x128xf32>
    %54 = vector.broadcast %53 : vector<1x128xf32> to vector<8x128xf32>
    %55 = arith.addf %52, %54 : vector<8x128xf32>
    %cst_16 = arith.constant 0.000000e+00 : f32
    %56 = vector.broadcast %cst_16 : f32 to vector<8x128xf32>
    %57 = arith.maximumf %55, %56 : vector<8x128xf32>
    %c0_17 = arith.constant 0 : index
    %c0_18 = arith.constant 0 : index
    %58 = vector.load %arg4[%c0_17, %c0_18] : memref<128x128xf32, #tpu.memory_space<vmem>>, vector<128x128xf32>
    %cst_19 = arith.constant dense<0.000000e+00> : vector<8x128xf32>
    %59 = tpu.matmul %57, %58, %cst_19 {dimension_numbers = #tpu.dot_dimension_numbers<[1], [0], [0], [1], [0, 0, 1, 1], [], []>} : vector<8x128xf32>, vector<128x128xf32>, vector<8x128xf32> -> vector<8x128xf32>
    %c0_20 = arith.constant 0 : index
    %c0_21 = arith.constant 0 : index
    %60 = vector.load %arg5[%c0_20, %c0_21] : memref<1x128xf32, #tpu.memory_space<vmem>>, vector<1x128xf32>
    %61 = vector.broadcast %60 : vector<1x128xf32> to vector<8x128xf32>
    %62 = arith.addf %59, %61 : vector<8x128xf32>
    %cst_22 = arith.constant dense<0xFF800000> : vector<8xf32>
    %63 = vector.multi_reduction <maximumf>, %62, %cst_22 [1] : vector<8x128xf32> to vector<8xf32>
    %64 = vector.shape_cast %63 : vector<8xf32> to vector<8x1xf32>
    %65 = vector.broadcast %64 : vector<8x1xf32> to vector<8x128xf32>
    %66 = arith.subf %62, %65 : vector<8x128xf32>
    %67 = math.exp %66 : vector<8x128xf32>
    %cst_23 = arith.constant dense<0.000000e+00> : vector<8xf32>
    %68 = vector.multi_reduction <add>, %67, %cst_23 [1] : vector<8x128xf32> to vector<8xf32>
    %69 = vector.shape_cast %68 : vector<8xf32> to vector<8x1xf32>
    %70 = math.log %69 : vector<8x1xf32>
    %71 = vector.broadcast %70 : vector<8x1xf32> to vector<8x128xf32>
    %72 = arith.subf %66, %71 : vector<8x128xf32>
    %c0_24 = arith.constant 0 : index
    %c0_25 = arith.constant 0 : index
    %73 = vector.load %arg6[%c0_24, %c0_25] : memref<8x128xf32, #tpu.memory_space<vmem>>, vector<8x128xf32>
    tpu.vector_store %arg6[%c0_24, %c0_25], %72 {strides = array<i32>} : memref<8x128xf32, #tpu.memory_space<vmem>>, vector<8x128xf32>,
    return
  }
  func.func @transform_0(%arg0: i32) -> (i32, i32) {
    %c0_i32 = arith.constant 0 : i32
    %c0_i32_0 = arith.constant 0 : i32
    return %arg0, %c0_i32 : i32, i32
  }
  func.func @transform_1(%arg0: i32) -> (i32, i32) {
    %c0_i32 = arith.constant 0 : i32
    %c0_i32_0 = arith.constant 0 : i32
    %c0_i32_1 = arith.constant 0 : i32
    return %c0_i32, %c0_i32_0 : i32, i32
  }
  func.func @transform_2(%arg0: i32) -> (i32, i32) {
    %c0_i32 = arith.constant 0 : i32
    %c0_i32_0 = arith.constant 0 : i32
    %c0_i32_1 = arith.constant 0 : i32
    return %c0_i32, %c0_i32_0 : i32, i32
  }
  func.func @transform_3(%arg0: i32) -> (i32, i32) {
    %c0_i32 = arith.constant 0 : i32
    %c0_i32_0 = arith.constant 0 : i32
    %c0_i32_1 = arith.constant 0 : i32
    return %c0_i32, %c0_i32_0 : i32, i32
  }
  func.func @transform_4(%arg0: i32) -> (i32, i32) {
    %c0_i32 = arith.constant 0 : i32
    %c0_i32_0 = arith.constant 0 : i32
    %c0_i32_1 = arith.constant 0 : i32
    return %c0_i32, %c0_i32_0 : i32, i32
  }
  func.func @transform_5(%arg0: i32) -> (i32, i32) {
    %c0_i32 = arith.constant 0 : i32
    %c0_i32_0 = arith.constant 0 : i32
    return %arg0, %c0_i32 : i32, i32
  }
}

</mosaic_0001>

<llo_original>
// kernel: ngram_forward.1
$region0: #{ngram_forward.1}
  #allocation0 [shape = 'u32[]', space=smem, size = 0x4, offset = 0x4, fixed_abs, tag = 'smem constant byte address 0x4 - core index']
  #allocation1 [shape = 'u32[144,128]{1,0:T(1,128)}', space=vmem, size = 0x12000, scoped, tag = 'internal scratch']
  #allocation2 [shape = 'f32[8,512]{1,0:T(8,128)}', space=vmem, size = 0x4000, scoped, tag = 'scratch operand']
  %s0 = inlined_call_operand.vmem [shape: s32[16,8], index: 0, kind: input, shape index: {}]
  %s1 = inlined_call_operand.vmem [shape: f32[512,128], index: 1, kind: input, shape index: {}]
  %s2 = inlined_call_operand.vmem [shape: f32[1,128], index: 2, kind: input, shape index: {}]
  %s3 = inlined_call_operand.vmem [shape: f32[128,128], index: 3, kind: input, shape index: {}]
  %s4 = inlined_call_operand.vmem [shape: f32[1,128], index: 4, kind: input, shape index: {}]
  %s5 = inlined_call_operand.hbm [shape: f32[16,128], index: 5, kind: output, shape index: {}]
  %s6 = sld [smem:[#allocation0]]
  $region53: #{ngram_forward.1} parent=0
    _
  %s8 = ssub.s32 1, %s6
  %s9 = scalar_select 0, %s8, %s6
  $region1: #{ngram_forward.1} parent=0
    #allocation3 [shape = 'u8[8192]{0}', space=vmem, size = 0x2000, scoped, tag = 'output window, operand 0']
    #allocation4 [shape = 's32[2]{0}', space=sflag, size = 0x8, scoped, tag = 'scoped memory for ngram_forward.1']
    %10 = vsyncpa [#allocation4], 0
    %s11 = scalar_lea.sflag [#allocation4], 1
    %12 = vsyncpa %s11, 0
    loop: start=0, step=1, limit=4
    $region2: #{ngram_forward.1} parent=1 // loop_pre_header
      _
    $region3: #{ngram_forward.1} parent=1 // loop_header
      %s14 = sphi 0, %s18
      %p15 = scmp.ge.s32.totalorder %s14, 4
      %s24 = sphi 0, %s26
      %s27 = sphi 0, %s24
      %s28 = sphi 0, %s27
      %s44 = sphi 0, %s28
      %s48 = sphi 0, %s48
      %s50 = sphi 0, %s48
      %s51 = sphi 0, %s50
      %s65 = sphi 0, %s51
      %s69 = sphi 0, %s69
      %s71 = sphi 0, %s69
      %s72 = sphi 0, %s71
      %s86 = sphi 0, %s72
      %s90 = sphi 0, %s90
      %s92 = sphi 0, %s90
      %s93 = sphi 0, %s92
      %s107 = sphi 0, %s93
      %s111 = sphi 0, %s111
      %s113 = sphi 0, %s111
      %s114 = sphi 0, %s113
      %s128 = sphi 0, %s114
      %s134 = sphi 0, %s136
      %s137 = sphi 0, %s134
      %s138 = sphi 0, %s137
      %s154 = sphi 0, %s138
    $region4: #{ngram_forward.1} parent=1 // loop_header_branch
      %17 = sbr.rel (%p15) target = $region8
    $region5: #{ngram_forward.1} parent=1 // loop_body
      %s19 = ssub.s32 %s14, 1
      %s20 = ssub.s32 %s14, 2
      %s21 = sadd.s32 %s14, 1
      %s22 = ssub.s32 %s14, %s21
      %p23 = scmp.eq.s32.totalorder %s22, 0
      %s25 = sadd.s32 %s24, 1
      %s26 = scalar_select %p23, %s24, %s25
      %p29 = pneg %p23
      %p30 = scmp.eq.s32.totalorder %s14, 1
      %p31 = por %p29, %p30
      %p32 = scmp.ne.s32.totalorder %s24, %s27
      %p33 = scmp.eq.s32.totalorder %s14, 0
      %p34 = por %p32, %p33
      %p35 = scmp.ne.s32.totalorder %s24, %s27
      %p36 = scmp.eq.s32.totalorder %s19, 1
      %p37 = por %p35, %p36
      %p38 = scmp.ne.s32.totalorder %s27, %s28
      %p39 = scmp.eq.s32.totalorder %s19, 0
      %p40 = por %p38, %p39
      %p41 = scmp.ne.s32.totalorder %s27, %s28
      %p42 = scmp.eq.s32.totalorder %s20, 1
      %p43 = por %p41, %p42
      %p45 = scmp.ne.s32.totalorder %s28, %s44
      %p46 = scmp.eq.s32.totalorder %s20, 0
      %p47 = por %p45, %p46
      %s49 = sadd.s32 %s48, 1
      %p52 = scmp.eq.s32.totalorder %s14, 1
      %p53 = scmp.ne.s32.totalorder %s48, %s50
      %p54 = scmp.eq.s32.totalorder %s14, 0
      %p55 = por %p53, %p54
      %p56 = scmp.ne.s32.totalorder %s48, %s50
      %p57 = scmp.eq.s32.totalorder %s19, 1
      %p58 = por %p56, %p57
      %p59 = scmp.ne.s32.totalorder %s50, %s51
      %p60 = scmp.eq.s32.totalorder %s19, 0
      %p61 = por %p59, %p60
      %p62 = scmp.ne.s32.totalorder %s50, %s51
      %p63 = scmp.eq.s32.totalorder %s20, 1
      %p64 = por %p62, %p63
      %p66 = scmp.ne.s32.totalorder %s51, %s65
      %p67 = scmp.eq.s32.totalorder %s20, 0
      %p68 = por %p66, %p67
      %s70 = sadd.s32 %s69, 1
      %p73 = scmp.eq.s32.totalorder %s14, 1
      %p74 = scmp.ne.s32.totalorder %s69, %s71
      %p75 = scmp.eq.s32.totalorder %s14, 0
      %p76 = por %p74, %p75
      %p77 = scmp.ne.s32.totalorder %s69, %s71
      %p78 = scmp.eq.s32.totalorder %s19, 1
      %p79 = por %p77, %p78
      %p80 = scmp.ne.s32.totalorder %s71, %s72
      %p81 = scmp.eq.s32.totalorder %s19, 0
      %p82 = por %p80, %p81
      %p83 = scmp.ne.s32.totalorder %s71, %s72
      %p84 = scmp.eq.s32.totalorder %s20, 1
      %p85 = por %p83, %p84
      %p87 = scmp.ne.s32.totalorder %s72, %s86
      %p88 = scmp.eq.s32.totalorder %s20, 0
      %p89 = por %p87, %p88
      %s91 = sadd.s32 %s90, 1
      %p94 = scmp.eq.s32.totalorder %s14, 1
      %p95 = scmp.ne.s32.totalorder %s90, %s92
      %p96 = scmp.eq.s32.totalorder %s14, 0
      %p97 = por %p95, %p96
      %p98 = scmp.ne.s32.totalorder %s90, %s92
      %p99 = scmp.eq.s32.totalorder %s19, 1
      %p100 = por %p98, %p99
      %p101 = scmp.ne.s32.totalorder %s92, %s93
      %p102 = scmp.eq.s32.totalorder %s19, 0
      %p103 = por %p101, %p102
      %p104 = scmp.ne.s32.totalorder %s92, %s93
      %p105 = scmp.eq.s32.totalorder %s20, 1
      %p106 = por %p104, %p105
      %p108 = scmp.ne.s32.totalorder %s93, %s107
      %p109 = scmp.eq.s32.totalorder %s20, 0
      %p110 = por %p108, %p109
      %s112 = sadd.s32 %s111, 1
      %p115 = scmp.eq.s32.totalorder %s14, 1
      %p116 = scmp.ne.s32.totalorder %s111, %s113
      %p117 = scmp.eq.s32.totalorder %s14, 0
      %p118 = por %p116, %p117
      %p119 = scmp.ne.s32.totalorder %s111, %s113
      %p120 = scmp.eq.s32.totalorder %s19, 1
      %p121 = por %p119, %p120
      %p122 = scmp.ne.s32.totalorder %s113, %s114
      %p123 = scmp.eq.s32.totalorder %s19, 0
      %p124 = por %p122, %p123
      %p125 = scmp.ne.s32.totalorder %s113, %s114
      %p126 = scmp.eq.s32.totalorder %s20, 1
      %p127 = por %p125, %p126
      %p129 = scmp.ne.s32.totalorder %s114, %s128
      %p130 = scmp.eq.s32.totalorder %s20, 0
      %p131 = por %p129, %p130
      %s132 = ssub.s32 %s14, %s21
      %p133 = scmp.eq.s32.totalorder %s132, 0
      %s135 = sadd.s32 %s134, 1
      %s136 = scalar_select %p133, %s134, %s135
      %p139 = pneg %p133
      %p140 = scmp.eq.s32.totalorder %s14, 1
      %p141 = por %p139, %p140
      %p142 = scmp.ne.s32.totalorder %s134, %s137
      %p143 = scmp.eq.s32.totalorder %s14, 0
      %p144 = por %p142, %p143
      %p145 = scmp.ne.s32.totalorder %s134, %s137
      %p146 = scmp.eq.s32.totalorder %s19, 1
      %p147 = por %p145, %p146
      %p148 = scmp.ne.s32.totalorder %s137, %s138
      %p149 = scmp.eq.s32.totalorder %s19, 0
      %p150 = por %p148, %p149
      %p151 = scmp.ne.s32.totalorder %s137, %s138
      %p152 = scmp.eq.s32.totalorder %s20, 1
      %p153 = por %p151, %p152
      %p155 = scmp.ne.s32.totalorder %s138, %s154
      %p156 = scmp.eq.s32.totalorder %s20, 0
      %p157 = por %p155, %p156
      %p158 = scmp.le.s32.totalorder 1, %s14
      %p159 = scmp.lt.s32.totalorder %s14, 3
      %p160 = pnand %p158, %p159
      %p161 = pneg %p160
      // Predicated region
      $region9: #{ngram_forward.1} parent=5 // pred_check
        _
      $region10: #{ngram_forward.1} parent=5 // pred_check_branch
        %163 = sbr.rel (%p160) target = $region12
      $region11: #{ngram_forward.1} parent=5 // pred_region
        %s164 = ssub.s32 %s14, 1
        // Predicated region
        $region13: #{ngram_forward.1} parent=11 // pred_check
          %p165 = pneg %p61
        $region14: #{ngram_forward.1} parent=11 // pred_check_branch
          %167 = sbr.rel (%p165) target = $region16
        $region15: #{ngram_forward.1} parent=11 // pred_region
          _
        $region16: #{ngram_forward.1} parent=11 // pred_fallthru
          _
        // Predicated region
        $region17: #{ngram_forward.1} parent=11 // pred_check
          %p168 = pneg %p82
        $region18: #{ngram_forward.1} parent=11 // pred_check_branch
          %170 = sbr.rel (%p168) target = $region20
        $region19: #{ngram_forward.1} parent=11 // pred_region
          _
        $region20: #{ngram_forward.1} parent=11 // pred_fallthru
          _
        // Predicated region
        $region21: #{ngram_forward.1} parent=11 // pred_check
          %p171 = pneg %p103
        $region22: #{ngram_forward.1} parent=11 // pred_check_branch
          %173 = sbr.rel (%p171) target = $region24
        $region23: #{ngram_forward.1} parent=11 // pred_region
          _
        $region24: #{ngram_forward.1} parent=11 // pred_fallthru
          _
        // Predicated region
        $region25: #{ngram_forward.1} parent=11 // pred_check
          %p174 = pneg %p124
        $region26: #{ngram_forward.1} parent=11 // pred_check_branch
          %176 = sbr.rel (%p174) target = $region28
        $region27: #{ngram_forward.1} parent=11 // pred_region
          _
        $region28: #{ngram_forward.1} parent=11 // pred_fallthru
          _
      $region12: #{ngram_forward.1} parent=5 // pred_fallthru
        _
      %p177 = scmp.lt.s32.totalorder %s14, 2
      // Predicated region
      $region29: #{ngram_forward.1} parent=5 // pred_check
        %p178 = pneg %p177
      $region30: #{ngram_forward.1} parent=5 // pred_check_branch
        %180 = sbr.rel (%p178) target = $region32
      $region31: #{ngram_forward.1} parent=5 // pred_region
        // Predicated region
        $region33: #{ngram_forward.1} parent=31 // pred_check
          %p181 = pneg %p34
        $region34: #{ngram_forward.1} parent=31 // pred_check_branch
          %183 = sbr.rel (%p181) target = $region36
        $region35: #{ngram_forward.1} parent=31 // pred_region
          %p184 = scmp.lt.s32.totalorder %s14, 1
          %s185 = scalar_select %p184, %s14, 1
          %s186 = smul.addr %s185, 8
          %s187 = scalar_lea.vmem %s0, %s186
        $region36: #{ngram_forward.1} parent=31 // pred_fallthru
          _
      $region32: #{ngram_forward.1} parent=5 // pred_fallthru
        _
      %p188 = scmp.le.s32.totalorder 1, %s14
      %p189 = scmp.lt.s32.totalorder %s14, 3
      %p190 = pnand %p188, %p189
      %p191 = pneg %p190
      // Predicated region
      $region37: #{ngram_forward.1} parent=5 // pred_check
        _
      $region38: #{ngram_forward.1} parent=5 // pred_check_branch
        %193 = sbr.rel (%p190) target = $region40
      $region39: #{ngram_forward.1} parent=5 // pred_region
        %s194 = ssub.s32 %s14, 1
        %p195 = scmp.lt.s32.totalorder %s19, 1
        %s196 = scalar_select %p195, %s19, 1
        %s197 = smul.addr %s196, 8
        %s198 = scalar_lea.vmem %s0, %s197
        %p199 = pneg %p40
        %p200 = pneg %p37
        %p201 = pneg %p61
        %p202 = pneg %p58
        %p203 = pneg %p82
        %p204 = pneg %p79
        %p205 = pneg %p103
        %p206 = pneg %p100
        %p207 = pneg %p124
        %p208 = pneg %p121
        %p209 = pneg %p150
        %p210 = pneg %p147
        %s211 = sand.u32 %s137, 1
        %s212 = scalar_lea.sflag [#allocation4], %s211
        %s213 = sand.u32 %s137, 1
        %s214 = smul.addr %s213, 8
        %s215 = scalar_lea.vmem [#allocation3], %s214
        %p216 = scmp.lt.s32.totalorder %s19, 1
        %s217 = scalar_select %p216, %s19, 1
        %s218 = smul.addr %s217, 8
        %s219 = scalar_lea.vmem %s0, %s218
        %v220 = vld [vmem:[%s219] sm:$0xff]
        %v221 = vlaneseq
        %v222 = vand.u32 %v221, 127
        %223 = vset.pattern.permute.xlu0 0
        %224 = vperm.xlu0 %223, %v220
        %v225 = vpop.permute.xlu0 %224
        %vm226 = vcmp.eq.s32.totalorder %v225, %v222
        %v227 = vsel %vm226, 1, 0
        %v228 = vcvt.s32.f32 %v227
        %vm229 = vcmask 523264
        %230 = vst.msk [vmem:[#allocation2] sm:$0xff] %vm229, %v228
        %231 = vset.pattern.permute.xlu0 1
        %232 = vperm.xlu0 %231, %v220
        %v233 = vpop.permute.xlu0 %232
        %vm234 = vcmp.eq.s32.totalorder %v233, %v222
        %v235 = vsel %vm234, 1, 0
        %v236 = vcvt.s32.f32 %v235
        %238 = vrot.lane.b32.xlu0 %v236, 64
        %v239 = vpop.permute.xlu0 %238
        %vm241 = vcmask 1048064
        %242 = vst.msk [vmem:[#allocation2] sm:$0xff] %vm241, %v239
        %243 = vset.pattern.permute.xlu0 2
        %244 = vperm.xlu0 %243, %v220
        %v245 = vpop.permute.xlu0 %244
        %vm246 = vcmp.eq.s32.totalorder %v245, %v222
        %v247 = vsel %vm246, 1, 0
        %v248 = vcvt.s32.f32 %v247
        %249 = vst.msk [vmem:[#allocation2 + $0x8] sm:$0xff] %vm229, %v248
        %250 = vset.pattern.permute.xlu0 3
        %251 = vperm.xlu0 %250, %v220
        %v252 = vpop.permute.xlu0 %251
        %vm253 = vcmp.eq.s32.totalorder %v252, %v222
        %v254 = vsel %vm253, 1, 0
        %v255 = vcvt.s32.f32 %v254
        %257 = vrot.lane.b32.xlu0 %v255, 64
        %v258 = vpop.permute.xlu0 %257
        %260 = vst.msk [vmem:[#allocation2 + $0x8] sm:$0xff] %vm241, %v258
        %261 = vset.pattern.permute.xlu0 4
        %262 = vperm.xlu0 %261, %v220
        %v263 = vpop.permute.xlu0 %262
        %vm264 = vcmp.eq.s32.totalorder %v263, %v222
        %v265 = vsel %vm264, 1, 0
        %v266 = vcvt.s32.f32 %v265
        %267 = vst.msk [vmem:[#allocation2 + $0x10] sm:$0xff] %vm229, %v266
        %268 = vset.pattern.permute.xlu0 5
        %269 = vperm.xlu0 %268, %v220
        %v270 = vpop.permute.xlu0 %269
        %vm271 = vcmp.eq.s32.totalorder %v270, %v222
        %v272 = vsel %vm271, 1, 0
        %v273 = vcvt.s32.f32 %v272
        %275 = vrot.lane.b32.xlu0 %v273, 64
        %v276 = vpop.permute.xlu0 %275
        %278 = vst.msk [vmem:[#allocation2 + $0x10] sm:$0xff] %vm241, %v276
        %279 = vset.pattern.permute.xlu0 6
        %280 = vperm.xlu0 %279, %v220
        %v281 = vpop.permute.xlu0 %280
        %vm282 = vcmp.eq.s32.totalorder %v281, %v222
        %v283 = vsel %vm282, 1, 0
        %v284 = vcvt.s32.f32 %v283
        %285 = vst.msk [vmem:[#allocation2 + $0x18] sm:$0xff] %vm229, %v284
        %286 = vset.pattern.permute.xlu0 7
        %287 = vperm.xlu0 %286, %v220
        %v288 = vpop.permute.xlu0 %287
        %vm289 = vcmp.eq.s32.totalorder %v288, %v222
        %v290 = vsel %vm289, 1, 0
        %v291 = vcvt.s32.f32 %v290
        %293 = vrot.lane.b32.xlu0 %v291, 64
        %v294 = vpop.permute.xlu0 %293
        %296 = vst.msk [vmem:[#allocation2 + $0x18] sm:$0xff] %vm241, %v294
        %v297 = vld [vmem:[#allocation2] sm:$0xff]
        %v298 = vld [vmem:[#allocation2 + $0x8] sm:$0xff]
        %v299 = vld [vmem:[#allocation2 + $0x10] sm:$0xff]
        %v300 = vld [vmem:[#allocation2 + $0x18] sm:$0xff]
        %v301 = vld [vmem:[%s1] sm:$0xff]
        %v302 = vld [vmem:[%s1 + $0x8] sm:$0xff]
        %v303 = vld [vmem:[%s1 + $0x10] sm:$0xff]
        %v304 = vld [vmem:[%s1 + $0x18] sm:$0xff]
        %v305 = vld [vmem:[%s1 + $0x20] sm:$0xff]
        %v306 = vld [vmem:[%s1 + $0x28] sm:$0xff]
        %v307 = vld [vmem:[%s1 + $0x30] sm:$0xff]
        %v308 = vld [vmem:[%s1 + $0x38] sm:$0xff]
        %v309 = vld [vmem:[%s1 + $0x40] sm:$0xff]
        %v310 = vld [vmem:[%s1 + $0x48] sm:$0xff]
        %v311 = vld [vmem:[%s1 + $0x50] sm:$0xff]
        %v312 = vld [vmem:[%s1 + $0x58] sm:$0xff]
        %v313 = vld [vmem:[%s1 + $0x60] sm:$0xff]
        %v314 = vld [vmem:[%s1 + $0x68] sm:$0xff]
        %v315 = vld [vmem:[%s1 + $0x70] sm:$0xff]
        %v316 = vld [vmem:[%s1 + $0x78] sm:$0xff]
        %v317 = vld [vmem:[%s1 + $0x80] sm:$0xff]
        %v318 = vld [vmem:[%s1 + $0x88] sm:$0xff]
        %v319 = vld [vmem:[%s1 + $0x90] sm:$0xff]
        %v320 = vld [vmem:[%s1 + $0x98] sm:$0xff]
        %v321 = vld [vmem:[%s1 + $0xa0] sm:$0xff]
        %v322 = vld [vmem:[%s1 + $0xa8] sm:$0xff]
        %v323 = vld [vmem:[%s1 + $0xb0] sm:$0xff]
        %v324 = vld [vmem:[%s1 + $0xb8] sm:$0xff]
        %v325 = vld [vmem:[%s1 + $0xc0] sm:$0xff]
        %v326 = vld [vmem:[%s1 + $0xc8] sm:$0xff]
        %v327 = vld [vmem:[%s1 + $0xd0] sm:$0xff]
        %v328 = vld [vmem:[%s1 + $0xd8] sm:$0xff]
        %v329 = vld [vmem:[%s1 + $0xe0] sm:$0xff]
        %v330 = vld [vmem:[%s1 + $0xe8] sm:$0xff]
        %v331 = vld [vmem:[%s1 + $0xf0] sm:$0xff]
        %v332 = vld [vmem:[%s1 + $0xf8] sm:$0xff]
        %v333 = vld [vmem:[%s1 + $0x100] sm:$0xff]
        %v334 = vld [vmem:[%s1 + $0x108] sm:$0xff]
        %v335 = vld [vmem:[%s1 + $0x110] sm:$0xff]
        %v336 = vld [vmem:[%s1 + $0x118] sm:$0xff]
        %v337 = vld [vmem:[%s1 + $0x120] sm:$0xff]
        %v338 = vld [vmem:[%s1 + $0x128] sm:$0xff]
        %v339 = vld [vmem:[%s1 + $0x130] sm:$0xff]
        %v340 = vld [vmem:[%s1 + $0x138] sm:$0xff]
        %v341 = vld [vmem:[%s1 + $0x140] sm:$0xff]
        %v342 = vld [vmem:[%s1 + $0x148] sm:$0xff]
        %v343 = vld [vmem:[%s1 + $0x150] sm:$0xff]
        %v344 = vld [vmem:[%s1 + $0x158] sm:$0xff]
        %v345 = vld [vmem:[%s1 + $0x160] sm:$0xff]
        %v346 = vld [vmem:[%s1 + $0x168] sm:$0xff]
        %v347 = vld [vmem:[%s1 + $0x170] sm:$0xff]
        %v348 = vld [vmem:[%s1 + $0x178] sm:$0xff]
        %v349 = vld [vmem:[%s1 + $0x180] sm:$0xff]
        %v350 = vld [vmem:[%s1 + $0x188] sm:$0xff]
        %v351 = vld [vmem:[%s1 + $0x190] sm:$0xff]
        %v352 = vld [vmem:[%s1 + $0x198] sm:$0xff]
        %v353 = vld [vmem:[%s1 + $0x1a0] sm:$0xff]
        %v354 = vld [vmem:[%s1 + $0x1a8] sm:$0xff]
        %v355 = vld [vmem:[%s1 + $0x1b0] sm:$0xff]
        %v356 = vld [vmem:[%s1 + $0x1b8] sm:$0xff]
        %v357 = vld [vmem:[%s1 + $0x1c0] sm:$0xff]
        %v358 = vld [vmem:[%s1 + $0x1c8] sm:$0xff]
        %v359 = vld [vmem:[%s1 + $0x1d0] sm:$0xff]
        %v360 = vld [vmem:[%s1 + $0x1d8] sm:$0xff]
        %v361 = vld [vmem:[%s1 + $0x1e0] sm:$0xff]
        %v362 = vld [vmem:[%s1 + $0x1e8] sm:$0xff]
        %v363 = vld [vmem:[%s1 + $0x1f0] sm:$0xff]
        %v364 = vld [vmem:[%s1 + $0x1f8] sm:$0xff]
        %v365 = vld [vmem:[%s2] sm:$0x1]
        %v367 = vlaneseq
        %v368 = vshrl.u32 %v367, 7
        %v369 = vsub.s32 0, %v368
        %v370 = vrot.slane %v365, %v369
        %372 = vmatprep.subr.mxu0 0.0
        %373 = vmatpush1.msra.mxu0 %v301
        %374 = vmatprep.subr.mxu0 0.0
        %375 = vmatpush1.msra.mxu0 %v302
        %376 = vmatprep.subr.mxu0 0.0
        %377 = vmatpush1.msra.mxu0 %v303
        %378 = vmatprep.subr.mxu0 0.0
        %379 = vmatpush1.msra.mxu0 %v304
        %380 = vmatprep.subr.mxu0 0.0
        %381 = vmatpush1.msra.mxu0 %v305
        %382 = vmatprep.subr.mxu0 0.0
        %383 = vmatpush1.msra.mxu0 %v306
        %384 = vmatprep.subr.mxu0 0.0
        %385 = vmatpush1.msra.mxu0 %v307
        %386 = vmatprep.subr.mxu0 0.0
        %387 = vmatpush1.msra.mxu0 %v308
        %388 = vmatprep.subr.mxu0 0.0
        %389 = vmatpush1.msra.mxu0 %v309
        %390 = vmatprep.subr.mxu0 0.0
        %391 = vmatpush1.msra.mxu0 %v310
        %392 = vmatprep.subr.mxu0 0.0
        %393 = vmatpush1.msra.mxu0 %v311
        %394 = vmatprep.subr.mxu0 0.0
        %395 = vmatpush1.msra.mxu0 %v312
        %396 = vmatprep.subr.mxu0 0.0
        %397 = vmatpush1.msra.mxu0 %v313
        %398 = vmatprep.subr.mxu0 0.0
        %399 = vmatpush1.msra.mxu0 %v314
        %400 = vmatprep.subr.mxu0 0.0
        %401 = vmatpush1.msra.mxu0 %v315
        %402 = vmatprep.subr.mxu0 0.0
        %403 = vmatpush1.msra.mxu0 %v316
        %404 = vmatprep.subr.mxu0 0.0
        %405 = vmatpush1.msra.mxu0 %v317
        %406 = vmatprep.subr.mxu0 0.0
        %407 = vmatpush1.msra.mxu0 %v318
        %408 = vmatprep.subr.mxu0 0.0
        %409 = vmatpush1.msra.mxu0 %v319
        %410 = vmatprep.subr.mxu0 0.0
        %411 = vmatpush1.msra.mxu0 %v320
        %412 = vmatprep.subr.mxu0 0.0
        %413 = vmatpush1.msra.mxu0 %v321
        %414 = vmatprep.subr.mxu0 0.0
        %415 = vmatpush1.msra.mxu0 %v322
        %416 = vmatprep.subr.mxu0 0.0
        %417 = vmatpush1.msra.mxu0 %v323
        %418 = vmatprep.subr.mxu0 0.0
        %419 = vmatpush1.msra.mxu0 %v324
        %420 = vmatprep.subr.mxu0 0.0
        %421 = vmatpush1.msra.mxu0 %v325
        %422 = vmatprep.subr.mxu0 0.0
        %423 = vmatpush1.msra.mxu0 %v326
        %424 = vmatprep.subr.mxu0 0.0
        %425 = vmatpush1.msra.mxu0 %v327
        %426 = vmatprep.subr.mxu0 0.0
        %427 = vmatpush1.msra.mxu0 %v328
        %428 = vmatprep.subr.mxu0 0.0
        %429 = vmatpush1.msra.mxu0 %v329
        %430 = vmatprep.subr.mxu0 0.0
        %431 = vmatpush1.msra.mxu0 %v330
        %432 = vmatprep.subr.mxu0 0.0
        %433 = vmatpush1.msra.mxu0 %v331
        %434 = vmatprep.subr.mxu0 0.0
        %435 = vmatpush1.msra.mxu0 %v332
        %436 = vmatprep.mubr.f32.mxu0 %v298
        %437 = vmatmul.mubr.f32.gmra.mrb[0].mxu0 %v297
        %v438 = vpop.f32.mrb[0].mxu0
        %v439 = vadd.f32 %v370, %v438
        %v440 = vpop.f32.mrb[0].mxu0
        %441 = vdwg.mxu0
        %442 = vmatprep.subr.mxu0 0.0
        %443 = vmatpush1.msra.mxu0 %v333
        %444 = vmatprep.subr.mxu0 0.0
        %445 = vmatpush1.msra.mxu0 %v334
        %446 = vmatprep.subr.mxu0 0.0
        %447 = vmatpush1.msra.mxu0 %v335
        %448 = vmatprep.subr.mxu0 0.0
        %449 = vmatpush1.msra.mxu0 %v336
        %450 = vmatprep.subr.mxu0 0.0
        %451 = vmatpush1.msra.mxu0 %v337
        %452 = vmatprep.subr.mxu0 0.0
        %453 = vmatpush1.msra.mxu0 %v338
        %454 = vmatprep.subr.mxu0 0.0
        %455 = vmatpush1.msra.mxu0 %v339
        %456 = vmatprep.subr.mxu0 0.0
        %457 = vmatpush1.msra.mxu0 %v340
        %458 = vmatprep.subr.mxu0 0.0
        %459 = vmatpush1.msra.mxu0 %v341
        %460 = vmatprep.subr.mxu0 0.0
        %461 = vmatpush1.msra.mxu0 %v342
        %462 = vmatprep.subr.mxu0 0.0
        %463 = vmatpush1.msra.mxu0 %v343
        %464 = vmatprep.subr.mxu0 0.0
        %465 = vmatpush1.msra.mxu0 %v344
        %466 = vmatprep.subr.mxu0 0.0
        %467 = vmatpush1.msra.mxu0 %v345
        %468 = vmatprep.subr.mxu0 0.0
        %469 = vmatpush1.msra.mxu0 %v346
        %470 = vmatprep.subr.mxu0 0.0
        %471 = vmatpush1.msra.mxu0 %v347
        %472 = vmatprep.subr.mxu0 0.0
        %473 = vmatpush1.msra.mxu0 %v348
        %474 = vmatprep.subr.mxu0 0.0
        %475 = vmatpush1.msra.mxu0 %v349
        %476 = vmatprep.subr.mxu0 0.0
        %477 = vmatpush1.msra.mxu0 %v350
        %478 = vmatprep.subr.mxu0 0.0
        %479 = vmatpush1.msra.mxu0 %v351
        %480 = vmatprep.subr.mxu0 0.0
        %481 = vmatpush1.msra.mxu0 %v352
        %482 = vmatprep.subr.mxu0 0.0
        %483 = vmatpush1.msra.mxu0 %v353
        %484 = vmatprep.subr.mxu0 0.0
        %485 = vmatpush1.msra.mxu0 %v354
        %486 = vmatprep.subr.mxu0 0.0
        %487 = vmatpush1.msra.mxu0 %v355
        %488 = vmatprep.subr.mxu0 0.0
        %489 = vmatpush1.msra.mxu0 %v356
        %490 = vmatprep.subr.mxu0 0.0
        %491 = vmatpush1.msra.mxu0 %v357
        %492 = vmatprep.subr.mxu0 0.0
        %493 = vmatpush1.msra.mxu0 %v358
        %494 = vmatprep.subr.mxu0 0.0
        %495 = vmatpush1.msra.mxu0 %v359
        %496 = vmatprep.subr.mxu0 0.0
        %497 = vmatpush1.msra.mxu0 %v360
        %498 = vmatprep.subr.mxu0 0.0
        %499 = vmatpush1.msra.mxu0 %v361
        %500 = vmatprep.subr.mxu0 0.0
        %501 = vmatpush1.msra.mxu0 %v362
        %502 = vmatprep.subr.mxu0 0.0
        %503 = vmatpush1.msra.mxu0 %v363
        %504 = vmatprep.subr.mxu0 0.0
        %505 = vmatpush1.msra.mxu0 %v364
        %506 = vmatprep.mubr.f32.mxu0 %v300
        %507 = vmatmul.mubr.f32.gmra.mrb[0].mxu0 %v299
        %v508 = vpop.f32.mrb[0].mxu0
        %v509 = vadd.f32 %v439, %v508
        %v510 = vpop.f32.mrb[0].mxu0
        %511 = vdwg.mxu0
        %v512 = vmax.f32 %v509, 0.0
        %v513 = vld [vmem:[%s3] sm:$0xff]
        %v514 = vld [vmem:[%s3 + $0x8] sm:$0xff]
        %v515 = vld [vmem:[%s3 + $0x10] sm:$0xff]
        %v516 = vld [vmem:[%s3 + $0x18] sm:$0xff]
        %v517 = vld [vmem:[%s3 + $0x20] sm:$0xff]
        %v518 = vld [vmem:[%s3 + $0x28] sm:$0xff]
        %v519 = vld [vmem:[%s3 + $0x30] sm:$0xff]
        %v520 = vld [vmem:[%s3 + $0x38] sm:$0xff]
        %v521 = vld [vmem:[%s3 + $0x40] sm:$0xff]
        %v522 = vld [vmem:[%s3 + $0x48] sm:$0xff]
        %v523 = vld [vmem:[%s3 + $0x50] sm:$0xff]
        %v524 = vld [vmem:[%s3 + $0x58] sm:$0xff]
        %v525 = vld [vmem:[%s3 + $0x60] sm:$0xff]
        %v526 = vld [vmem:[%s3 + $0x68] sm:$0xff]
        %v527 = vld [vmem:[%s3 + $0x70] sm:$0xff]
        %v528 = vld [vmem:[%s3 + $0x78] sm:$0xff]
        %v529 = vld [vmem:[%s4] sm:$0x1]
        %v531 = vlaneseq
        %v532 = vshrl.u32 %v531, 7
        %v533 = vsub.s32 0, %v532
        %v534 = vrot.slane %v529, %v533
        %536 = vmatprep.subr.mxu0 0.0
        %537 = vmatpush1.msra.mxu0 %v513
        %538 = vmatprep.subr.mxu0 0.0
        %539 = vmatpush1.msra.mxu0 %v514
        %540 = vmatprep.subr.mxu0 0.0
        %541 = vmatpush1.msra.mxu0 %v515
        %542 = vmatprep.subr.mxu0 0.0
        %543 = vmatpush1.msra.mxu0 %v516
        %544 = vmatprep.subr.mxu0 0.0
        %545 = vmatpush1.msra.mxu0 %v517
        %546 = vmatprep.subr.mxu0 0.0
        %547 = vmatpush1.msra.mxu0 %v518
        %548 = vmatprep.subr.mxu0 0.0
        %549 = vmatpush1.msra.mxu0 %v519
        %550 = vmatprep.subr.mxu0 0.0
        %551 = vmatpush1.msra.mxu0 %v520
        %552 = vmatprep.subr.mxu0 0.0
        %553 = vmatpush1.msra.mxu0 %v521
        %554 = vmatprep.subr.mxu0 0.0
        %555 = vmatpush1.msra.mxu0 %v522
        %556 = vmatprep.subr.mxu0 0.0
        %557 = vmatpush1.msra.mxu0 %v523
        %558 = vmatprep.subr.mxu0 0.0
        %559 = vmatpush1.msra.mxu0 %v524
        %560 = vmatprep.subr.mxu0 0.0
        %561 = vmatpush1.msra.mxu0 %v525
        %562 = vmatprep.subr.mxu0 0.0
        %563 = vmatpush1.msra.mxu0 %v526
        %564 = vmatprep.subr.mxu0 0.0
        %565 = vmatpush1.msra.mxu0 %v527
        %566 = vmatprep.subr.mxu0 0.0
        %567 = vmatpush1.msra.mxu0 %v528
        %568 = vmatprep.subr.mxu0 0.0
        %569 = vmatpush1.msra.mxu0 0.0
        %570 = vmatprep.subr.mxu0 0.0
        %571 = vmatpush1.msra.mxu0 0.0
        %572 = vmatprep.subr.mxu0 0.0
        %573 = vmatpush1.msra.mxu0 0.0
        %574 = vmatprep.subr.mxu0 0.0
        %575 = vmatpush1.msra.mxu0 0.0
        %576 = vmatprep.subr.mxu0 0.0
        %577 = vmatpush1.msra.mxu0 0.0
        %578 = vmatprep.subr.mxu0 0.0
        %579 = vmatpush1.msra.mxu0 0.0
        %580 = vmatprep.subr.mxu0 0.0
        %581 = vmatpush1.msra.mxu0 0.0
        %582 = vmatprep.subr.mxu0 0.0
        %583 = vmatpush1.msra.mxu0 0.0
        %584 = vmatprep.subr.mxu0 0.0
        %585 = vmatpush1.msra.mxu0 0.0
        %586 = vmatprep.subr.mxu0 0.0
        %587 = vmatpush1.msra.mxu0 0.0
        %588 = vmatprep.subr.mxu0 0.0
        %589 = vmatpush1.msra.mxu0 0.0
        %590 = vmatprep.subr.mxu0 0.0
        %591 = vmatpush1.msra.mxu0 0.0
        %592 = vmatprep.subr.mxu0 0.0
        %593 = vmatpush1.msra.mxu0 0.0
        %594 = vmatprep.subr.mxu0 0.0
        %595 = vmatpush1.msra.mxu0 0.0
        %596 = vmatprep.subr.mxu0 0.0
        %597 = vmatpush1.msra.mxu0 0.0
        %598 = vmatprep.subr.mxu0 0.0
        %599 = vmatpush1.msra.mxu0 0.0
        %600 = vmatprep.mubr.f32.mxu0 0.0
        %601 = vmatmul.mubr.f32.gmra.mrb[0].mxu0 %v512
        %v602 = vpop.f32.mrb[0].mxu0
        %v603 = vadd.f32 %v534, %v602
        %v604 = vpop.f32.mrb[0].mxu0
        %605 = vdwg.mxu0
        %606 = vmax.xlane.f32.xlu0 %v603
        %v607 = vpop.xlane.xlu0 %606
        %v608 = vsub.f32 %v603, %v607
        %v609 = vmul.f32 %v608, 1.442695
        %v610 = vpow.pop %v609
        %611 = vadd.xlane.f32.xlu0 %v610
        %v612 = vpop.xlane.xlu0 %611
        %v613 = vlog2.pop %v612
        %v614 = vmul.f32 %v613, 0.6931472
        %v615 = vsub.f32 %v608, %v614
        %616 = vst [vmem:[%s215] sm:$0xff] %v615
        %s617 = sand.u32 %s137, 1
        %s618 = scalar_lea.sflag [#allocation4], %s617
        %s619 = sand.u32 %s137, 1
        %s620 = smul.addr %s619, 8
        %s621 = scalar_lea.vmem [#allocation3], %s620
        // Predicated region
        $region41: #{ngram_forward.1} parent=39 // pred_check
          %p622 = pneg %p147
        $region42: #{ngram_forward.1} parent=39 // pred_check_branch
          %624 = sbr.rel (%p622) target = $region44
        $region43: #{ngram_forward.1} parent=39 // pred_region
          %s626 = ssub.s32 128, 128
          %627 = vsyncadd %s618, %s626
          %s628 = smul.addr %s19, 128
          %s629 = scalar_lea.hbm %s5, %s628
          %s631 = sshll.u32 %s621, 4
          %s632 = int_to_ptr.vmem [resolvable:$true] %s631
          %634 = dma.vmem_to_hbm [thread:$0]  %s632, 128, %s629, %s618
        $region44: #{ngram_forward.1} parent=39 // pred_fallthru
          _
      $region40: #{ngram_forward.1} parent=5 // pred_fallthru
        _
      %p635 = scmp.le.s32.totalorder 2, %s14
      // Predicated region
      $region45: #{ngram_forward.1} parent=5 // pred_check
        %p636 = pneg %p635
      $region46: #{ngram_forward.1} parent=5 // pred_check_branch
        %638 = sbr.rel (%p636) target = $region48
      $region47: #{ngram_forward.1} parent=5 // pred_region
        %s639 = ssub.s32 %s14, 2
        // Predicated region
        $region49: #{ngram_forward.1} parent=47 // pred_check
          %p640 = pneg %p153
        $region50: #{ngram_forward.1} parent=47 // pred_check_branch
          %642 = sbr.rel (%p640) target = $region52
        $region51: #{ngram_forward.1} parent=47 // pred_region
          %s643 = sand.u32 %s138, 1
          %s644 = scalar_lea.sflag [#allocation4], %s643
          %s645 = sand.u32 %s138, 1
          %s646 = smul.addr %s645, 8
          %s647 = scalar_lea.vmem [#allocation3], %s646
          %648 = dma.done %s644, 128
        $region52: #{ngram_forward.1} parent=47 // pred_fallthru
          _
      $region48: #{ngram_forward.1} parent=5 // pred_fallthru
        _
    $region6: #{ngram_forward.1} parent=1 // loop_footer
      %s18 = sadd.s32 1, %s14
    $region7: #{ngram_forward.1} parent=1 // loop_footer_branch
      %13 = sbr.rel target = $region3
    $region8: #{ngram_forward.1} parent=1 // loop_exit
      _
    %649 = vsyncpa [#allocation4], 1
    %s650 = scalar_lea.sflag [#allocation4], 1
    %651 = vsyncpa %s650, 1

</llo_original>
